<compile_context>
chip_gen: v5e
topology: v5e:2x2
jax: 0.10.0
libtpu: 0.0.40
codegen_flags: <defaults>
</compile_context>

<pallas_src>
import functools

import jax
import jax.numpy as jnp
from jax.experimental import pallas as pl
from jax.experimental.pallas import tpu as pltpu


def _pool_kernel(xt_ref, w1_ref, w2_ref, u_ref, eta_ref, pooled_ref):
    # xt_ref: (P, TM)  transposed rows of flattened pooling windows (lane-dense)
    # w1_ref, w2_ref: (P, P) Linear weights as stored by PyTorch (out, in)
    # u_ref: (1, TM)   one uniform sample in [0, 1) per window
    xt = xt_ref[...].astype(jnp.float32)
    w1 = w1_ref[...].astype(jnp.float32)
    w2 = w2_ref[...].astype(jnp.float32)
    u = u_ref[...].astype(jnp.float32)

    P = xt.shape[0]

    # pooling_layer: Linear(no bias) -> Tanh -> Linear(no bias) -> Softmax(window dim)
    # In the transposed layout:  logits[:, r] = W2 @ tanh(W1 @ x_r)
    h = jnp.tanh(jnp.dot(w1, xt, preferred_element_type=jnp.float32))
    logits = jnp.dot(w2, h, preferred_element_type=jnp.float32)

    mx = jnp.max(logits, axis=0, keepdims=True)                 # (1, TM)
    e = jnp.exp(logits - mx)                                    # (P, TM)
    s = jnp.sum(e, axis=0, keepdims=True)                       # (1, TM)
    # One divide per window (1, TM) only; safe in both interpret and Mosaic.
    inv_s = 1.0 / s
    eta = e * inv_s
    eta_ref[...] = eta.astype(eta_ref.dtype)

    # torch.multinomial(eta, 1): inverse-CDF sampling with one uniform per row.
    # cum[o, r] = sum_{i <= o} e[i, r]  via a lower-triangular ones matmul.
    ro = jax.lax.broadcasted_iota(jnp.int32, (P, P), 0)
    ci = jax.lax.broadcasted_iota(jnp.int32, (P, P), 1)
    lower = (ci <= ro).astype(jnp.float32)                      # (P, P)
    cum = jnp.dot(lower, e, preferred_element_type=jnp.float32)  # (P, TM)
    thr = u * s                                                 # (1, TM)
    idx = jnp.sum((cum < thr).astype(jnp.int32), axis=0, keepdims=True)
    idx = jnp.minimum(idx, P - 1)                               # guard fp edge at u ~ 1

    # Gather the picked window entry per row (one-hot over the sublane axis).
    rows = jax.lax.broadcasted_iota(jnp.int32, xt.shape, 0)
    onehot = (rows == idx).astype(jnp.float32)
    pooled_ref[...] = jnp.sum(xt * onehot, axis=0, keepdims=True).astype(pooled_ref.dtype)


@functools.partial(jax.jit, static_argnames=("p_x", "p_y", "block_rows"))
def stochastic_pool(c, w1, w2, key, *, p_x, p_y, block_rows=8192):
    """c: (B, C, H, W) f32; w1, w2: (P, P) Linear weights (out, in); key: PRNG key.

    Returns:
      pooled: (B, C, n, m) stochastically pooled feature map.
      etas:   (n*m*C, B, P) softmax distributions, stacked in the PyTorch list
              order (i, j, channel).
    """
    B, C, H, W = c.shape
    n = H // p_x
    m = W // p_y
    P = p_x * p_y
    R = B * C * n * m

    # X^T[P, R]: columns ordered (B, C, n, m) row-major; rows = flattened window.
    xt = c.reshape(B, C, n, p_x, m, p_y)
    xt = jnp.transpose(xt, (3, 5, 0, 1, 2, 4))       # (p_x, p_y, B, C, n, m)
    xt = xt.reshape(P, R).astype(jnp.float32)

    # Lane-dense tiles: TM is a multiple of 128 (large to amortize grid overhead,
    # small enough to fit v7x's 64 MiB VMEM with double buffering: ~2 MiB at 8192).
    tm = min(block_rows, pl.cdiv(R, 128) * 128)
    r_pad = pl.cdiv(R, tm) * tm
    if r_pad != R:
        xt = jnp.pad(xt, ((0, 0), (0, r_pad - R)))

    # One uniform per window, drawn outside the kernel (portable PRNG).
    u = jax.random.uniform(key, (1, r_pad), jnp.float32)

    w1 = jnp.asarray(w1, jnp.float32)
    w2 = jnp.asarray(w2, jnp.float32)

    grid = (r_pad // tm,)
    eta_t, pooled_t = pl.pallas_call(
        _pool_kernel,
        out_shape=(
            jax.ShapeDtypeStruct((P, r_pad), jnp.float32),
            jax.ShapeDtypeStruct((1, r_pad), jnp.float32),
        ),
        grid_spec=pltpu.PrefetchScalarGridSpec(
            num_scalar_prefetch=0,
            grid=grid,
            in_specs=[
                pl.BlockSpec((P, tm), lambda i: (0, i)),
                pl.BlockSpec((P, P), lambda i: (0, 0)),
                pl.BlockSpec((P, P), lambda i: (0, 0)),
                pl.BlockSpec((1, tm), lambda i: (0, i)),
            ],
            out_specs=[
                pl.BlockSpec((P, tm), lambda i: (0, i)),
                pl.BlockSpec((1, tm), lambda i: (0, i)),
            ],
        ),
        compiler_params=pltpu.CompilerParams(dimension_semantics=("parallel",)),
    )(xt, w1, w2, u)

    # pooled: columns are (B, C, n, m) row-major -> direct reshape, no transpose.
    pooled = pooled_t[0, :R].reshape(B, C, n, m)

    # etas: re-stack to PyTorch list order (i, j, channel) outer, batch inner.
    etas = eta_t[:, :R].reshape(P, B, C, n * m)
    etas = jnp.transpose(etas, (3, 2, 1, 0)).reshape(n * m * C, B, P)
    return pooled, etas


if __name__ == "__main__":
    key = jax.random.PRNGKey(0)
    k_c, k_w1, k_w2, k_samp = jax.random.split(key, 4)

    # Small shapes consistent with the module's forward.
    B, C, H, W = 2, 4, 16, 16
    p_x, p_y = 4, 4
    P = p_x * p_y

    c = jax.random.normal(k_c, (B, C, H, W), dtype=jnp.float32)
    # Deterministic Linear-style init: U(-1/sqrt(in), 1/sqrt(in)), shape (out, in).
    bound = 1.0 / jnp.sqrt(jnp.float32(P))
    w1 = jax.random.uniform(k_w1, (P, P), jnp.float32, -bound, bound)
    w2 = jax.random.uniform(k_w2, (P, P), jnp.float32, -bound, bound)

    pooled, etas = stochastic_pool(c, w1, w2, k_samp, p_x=p_x, p_y=p_y)
    jax.block_until_ready((pooled, etas))

    n, m = H // p_x, W // p_y
    assert pooled.shape == (B, C, n, m), pooled.shape
    assert etas.shape == (n * m * C, B, P), etas.shape

    # etas rows are softmax outputs -> sum to 1.
    assert bool(jnp.all(jnp.abs(jnp.sum(etas, axis=-1) - 1.0) < 1e-4))

    # etas must match a plain-JAX reference of the pooling MLP.
    windows = jnp.transpose(
        c.reshape(B, C, n, p_x, m, p_y), (0, 1, 2, 4, 3, 5)
    ).reshape(B, C, n, m, P)
    tile_slices = jnp.transpose(windows, (2, 3, 1, 0, 4)).reshape(n * m * C, B, P)
    ref_eta = jax.nn.softmax(jnp.tanh(tile_slices @ w1.T) @ w2.T, axis=-1)
    assert bool(jnp.all(jnp.abs(etas - ref_eta) < 5e-3))

    # every pooled value must come from its corresponding window.
    in_window = jnp.any(jnp.isclose(windows, pooled[..., None], atol=1e-6), axis=-1)
    assert bool(jnp.all(in_window))
    print("KERNEL_OK")
</pallas_src>

<mosaic_0001>
module attributes {stable_mosaic.version = 11 : i64} {
  func.func @_pool_kernel(%arg0: i32, %arg1: memref<16x128xf32, #tpu.memory_space<vmem>>, %arg2: memref<16x16xf32, #tpu.memory_space<vmem>>, %arg3: memref<16x16xf32, #tpu.memory_space<vmem>>, %arg4: memref<1x128xf32, #tpu.memory_space<vmem>>, %arg5: memref<16x128xf32, #tpu.memory_space<vmem>>, %arg6: memref<1x128xf32, #tpu.memory_space<vmem>>) attributes {dimension_semantics = [#tpu.dimension_semantics<parallel>], iteration_bounds = array<i64: 1>, scalar_prefetch = 0 : i64, scratch_operands = 0 : i64, tpu.core_type = #tpu.core_type<tc>, window_params = [{transform_indices = @transform_0, window_bounds = array<i64: 16, 128>}, {pipeline_mode = #tpu.pipeline_mode<synchronous>, transform_indices = @transform_1, window_bounds = array<i64: 16, 16>}, {pipeline_mode = #tpu.pipeline_mode<synchronous>, transform_indices = @transform_2, window_bounds = array<i64: 16, 16>}, {transform_indices = @transform_3, window_bounds = array<i64: 1, 128>}, {transform_indices = @transform_4, window_bounds = array<i64: 16, 128>}, {transform_indices = @transform_5, window_bounds = array<i64: 1, 128>}]} {
    %c0 = arith.constant 0 : index
    %c0_0 = arith.constant 0 : index
    %0 = vector.load %arg1[%c0, %c0_0] : memref<16x128xf32, #tpu.memory_space<vmem>>, vector<16x128xf32>
    %c0_1 = arith.constant 0 : index
    %c0_2 = arith.constant 0 : index
    %1 = vector.load %arg2[%c0_1, %c0_2] : memref<16x16xf32, #tpu.memory_space<vmem>>, vector<16x16xf32>
    %c0_3 = arith.constant 0 : index
    %c0_4 = arith.constant 0 : index
    %2 = vector.load %arg3[%c0_3, %c0_4] : memref<16x16xf32, #tpu.memory_space<vmem>>, vector<16x16xf32>
    %c0_5 = arith.constant 0 : index
    %c0_6 = arith.constant 0 : index
    %3 = vector.load %arg4[%c0_5, %c0_6] : memref<1x128xf32, #tpu.memory_space<vmem>>, vector<1x128xf32>
    %cst = arith.constant dense<0.000000e+00> : vector<16x128xf32>
    %4 = tpu.matmul %1, %0, %cst {dimension_numbers = #tpu.dot_dimension_numbers<[1], [0], [0], [1], [0, 0, 1, 1], [], []>} : vector<16x16xf32>, vector<16x128xf32>, vector<16x128xf32> -> vector<16x128xf32>
    %5 = math.tanh %4 : vector<16x128xf32>
    %cst_7 = arith.constant dense<0.000000e+00> : vector<16x128xf32>
    %6 = tpu.matmul %2, %5, %cst_7 {dimension_numbers = #tpu.dot_dimension_numbers<[1], [0], [0], [1], [0, 0, 1, 1], [], []>} : vector<16x16xf32>, vector<16x128xf32>, vector<16x128xf32> -> vector<16x128xf32>
    %cst_8 = arith.constant dense<0xFF800000> : vector<128xf32>
    %7 = vector.multi_reduction <maximumf>, %6, %cst_8 [0] : vector<16x128xf32> to vector<128xf32>
    %8 = vector.shape_cast %7 : vector<128xf32> to vector<1x128xf32>
    %9 = vector.broadcast %8 : vector<1x128xf32> to vector<16x128xf32>
    %10 = arith.subf %6, %9 : vector<16x128xf32>
    %11 = math.exp %10 : vector<16x128xf32>
    %cst_9 = arith.constant dense<0.000000e+00> : vector<128xf32>
    %12 = vector.multi_reduction <add>, %11, %cst_9 [0] : vector<16x128xf32> to vector<128xf32>
    %13 = vector.shape_cast %12 : vector<128xf32> to vector<1x128xf32>
    %cst_10 = arith.constant 1.000000e+00 : f32
    %14 = vector.broadcast %cst_10 : f32 to vector<1x128xf32>
    %15 = arith.divf %14, %13 : vector<1x128xf32>
    %16 = vector.broadcast %15 : vector<1x128xf32> to vector<16x128xf32>
    %17 = arith.mulf %11, %16 : vector<16x128xf32>
    %c0_11 = arith.constant 0 : index
    %c0_12 = arith.constant 0 : index
    %18 = vector.load %arg5[%c0_11, %c0_12] : memref<16x128xf32, #tpu.memory_space<vmem>>, vector<16x128xf32>
    tpu.vector_store %arg5[%c0_11, %c0_12], %17 {strides = array<i32>} : memref<16x128xf32, #tpu.memory_space<vmem>>, vector<16x128xf32>,
    %19 = tpu.iota {dimensions = array<i32: 0>} : vector<16x16xi32>
    %20 = tpu.iota {dimensions = array<i32: 1>} : vector<16x16xi32>
    %21 = arith.cmpi sle, %20, %19 : vector<16x16xi32>
    %22 = arith.extui %21 : vector<16x16xi1> to vector<16x16xi32>
    %23 = arith.sitofp %22 : vector<16x16xi32> to vector<16x16xf32>
    %cst_13 = arith.constant dense<0.000000e+00> : vector<16x128xf32>
    %24 = tpu.matmul %23, %11, %cst_13 {dimension_numbers = #tpu.dot_dimension_numbers<[1], [0], [0], [1], [0, 0, 1, 1], [], []>} : vector<16x16xf32>, vector<16x128xf32>, vector<16x128xf32> -> vector<16x128xf32>
    %25 = arith.mulf %3, %13 : vector<1x128xf32>
    %26 = vector.broadcast %25 : vector<1x128xf32> to vector<16x128xf32>
    %27 = arith.cmpf olt, %24, %26 : vector<16x128xf32>
    %28 = arith.extui %27 : vector<16x128xi1> to vector<16x128xi32>
    %cst_14 = arith.constant dense<0> : vector<128xi32>
    %29 = vector.multi_reduction <add>, %28, %cst_14 [0] : vector<16x128xi32> to vector<128xi32>
    %30 = vector.shape_cast %29 : vector<128xi32> to vector<1x128xi32>
    %c15_i32 = arith.constant 15 : i32
    %31 = vector.broadcast %c15_i32 : i32 to vector<1x128xi32>
    %32 = arith.minsi %30, %31 : vector<1x128xi32>
    %33 = tpu.iota {dimensions = array<i32: 0>} : vector<16x128xi32>
    %34 = vector.broadcast %32 : vector<1x128xi32> to vector<16x128xi32>
    %35 = arith.cmpi eq, %33, %34 : vector<16x128xi32>
    %36 = arith.extui %35 : vector<16x128xi1> to vector<16x128xi32>
    %37 = arith.sitofp %36 : vector<16x128xi32> to vector<16x128xf32>
    %38 = arith.mulf %0, %37 : vector<16x128xf32>
    %cst_15 = arith.constant dense<0.000000e+00> : vector<128xf32>
    %39 = vector.multi_reduction <add>, %38, %cst_15 [0] : vector<16x128xf32> to vector<128xf32>
    %40 = vector.shape_cast %39 : vector<128xf32> to vector<1x128xf32>
    %c0_16 = arith.constant 0 : index
    %c0_17 = arith.constant 0 : index
    %41 = vector.load %arg6[%c0_16, %c0_17] : memref<1x128xf32, #tpu.memory_space<vmem>>, vector<1x128xf32>
    tpu.vector_store %arg6[%c0_16, %c0_17], %40 {strides = array<i32>} : memref<1x128xf32, #tpu.memory_space<vmem>>, vector<1x128xf32>,
    return
  }
  func.func @transform_0(%arg0: i32) -> (i32, i32) {
    %c0_i32 = arith.constant 0 : i32
    %c0_i32_0 = arith.constant 0 : i32
    return %c0_i32, %arg0 : i32, i32
  }
  func.func @transform_1(%arg0: i32) -> (i32, i32) {
    %c0_i32 = arith.constant 0 : i32
    %c0_i32_0 = arith.constant 0 : i32
    %c0_i32_1 = arith.constant 0 : i32
    return %c0_i32, %c0_i32_0 : i32, i32
  }
  func.func @transform_2(%arg0: i32) -> (i32, i32) {
    %c0_i32 = arith.constant 0 : i32
    %c0_i32_0 = arith.constant 0 : i32
    %c0_i32_1 = arith.constant 0 : i32
    return %c0_i32, %c0_i32_0 : i32, i32
  }
  func.func @transform_3(%arg0: i32) -> (i32, i32) {
    %c0_i32 = arith.constant 0 : i32
    %c0_i32_0 = arith.constant 0 : i32
    return %c0_i32, %arg0 : i32, i32
  }
  func.func @transform_4(%arg0: i32) -> (i32, i32) {
    %c0_i32 = arith.constant 0 : i32
    %c0_i32_0 = arith.constant 0 : i32
    return %c0_i32, %arg0 : i32, i32
  }
  func.func @transform_5(%arg0: i32) -> (i32, i32) {
    %c0_i32 = arith.constant 0 : i32
    %c0_i32_0 = arith.constant 0 : i32
    return %c0_i32, %arg0 : i32, i32
  }
}

</mosaic_0001>

<llo_original>
// kernel: squeeze.5
$region0: #{squeeze.5}
  %s0 = inlined_call_operand.vmem [shape: f32[128], index: 0, kind: input, shape index: {}]
  %s1 = inlined_call_operand.hbm [shape: f32[2,4,4,4], index: 1, kind: output, shape index: {}]
  $region1: #{squeeze.5} parent=0
    #allocation0 [shape = 'u8[16384]{0}', space=vmem, size = 0x4000, scoped, tag = 'operand span for operand 1']
    #allocation1 [shape = 's32[1]{0}', space=sflag, size = 0x4, scoped, tag = 'scoped memory for squeeze.5']
    #allocation2 [shape = 'u8[32768]{0}', space=vmem, size = 0x8000, scoped, tag = 'scoped mem for output reshape']
    #allocation3 [shape = 'u8[4096]{0}', space=vmem, size = 0x1000, scoped, tag = 'scoped mem for input reshape']
    %2 = vsyncpa [#allocation1], 0
    %s4 = ssub.s32 2, 1
    %v5 = vld [vmem:[%s0] sm:%s4]
    %6 = vst [vmem:[#allocation3] sm:%s4] %v5
    %v7 = vld [vmem:[#allocation3] sm:$0x1]
    %vm8 = vcmask 31744
    %9 = vst.msk [vmem:[#allocation2] sm:$0x1] %vm8, %v7
    %v10 = vld [vmem:[#allocation3] sm:$0x1]
    %11 = vrot.lane.b32.xlu0 %v10, 124
    %v12 = vpop.permute.xlu0 %11
    %vm13 = vcmask 31744
    %s14 = scalar_lea.vmem [#allocation2], 1
    %15 = vst.msk [vmem:[%s14] sm:$0x1] %vm13, %v12
    %v16 = vld [vmem:[#allocation3] sm:$0x1]
    %17 = vrot.lane.b32.xlu0 %v16, 120
    %v18 = vpop.permute.xlu0 %17
    %vm19 = vcmask 31744
    %s20 = scalar_lea.vmem [#allocation2], 2
    %21 = vst.msk [vmem:[%s20] sm:$0x1] %vm19, %v18
    %v22 = vld [vmem:[#allocation3] sm:$0x1]
    %23 = vrot.lane.b32.xlu0 %v22, 116
    %v24 = vpop.permute.xlu0 %23
    %vm25 = vcmask 31744
    %s26 = scalar_lea.vmem [#allocation2], 3
    %27 = vst.msk [vmem:[%s26] sm:$0x1] %vm25, %v24
    %v28 = vld [vmem:[#allocation3] sm:$0x1]
    %29 = vrot.lane.b32.xlu0 %v28, 112
    %v30 = vpop.permute.xlu0 %29
    %vm31 = vcmask 31744
    %s32 = scalar_lea.vmem [#allocation2], 8
    %33 = vst.msk [vmem:[%s32] sm:$0x1] %vm31, %v30
    %v34 = vld [vmem:[#allocation3] sm:$0x1]
    %35 = vrot.lane.b32.xlu0 %v34, 108
    %v36 = vpop.permute.xlu0 %35
    %vm37 = vcmask 31744
    %s38 = scalar_lea.vmem [#allocation2], 9
    %39 = vst.msk [vmem:[%s38] sm:$0x1] %vm37, %v36
    %v40 = vld [vmem:[#allocation3] sm:$0x1]
    %41 = vrot.lane.b32.xlu0 %v40, 104
    %v42 = vpop.permute.xlu0 %41
    %vm43 = vcmask 31744
    %s44 = scalar_lea.vmem [#allocation2], 10
    %45 = vst.msk [vmem:[%s44] sm:$0x1] %vm43, %v42
    %v46 = vld [vmem:[#allocation3] sm:$0x1]
    %47 = vrot.lane.b32.xlu0 %v46, 100
    %v48 = vpop.permute.xlu0 %47
    %vm49 = vcmask 31744
    %s50 = scalar_lea.vmem [#allocation2], 11
    %51 = vst.msk [vmem:[%s50] sm:$0x1] %vm49, %v48
    %v52 = vld [vmem:[#allocation3] sm:$0x1]
    %53 = vrot.lane.b32.xlu0 %v52, 96
    %v54 = vpop.permute.xlu0 %53
    %vm55 = vcmask 31744
    %s56 = scalar_lea.vmem [#allocation2], 16
    %57 = vst.msk [vmem:[%s56] sm:$0x1] %vm55, %v54
    %v58 = vld [vmem:[#allocation3] sm:$0x1]
    %59 = vrot.lane.b32.xlu0 %v58, 92
    %v60 = vpop.permute.xlu0 %59
    %vm61 = vcmask 31744
    %s62 = scalar_lea.vmem [#allocation2], 17
    %63 = vst.msk [vmem:[%s62] sm:$0x1] %vm61, %v60
    %v64 = vld [vmem:[#allocation3] sm:$0x1]
    %65 = vrot.lane.b32.xlu0 %v64, 88
    %v66 = vpop.permute.xlu0 %65
    %vm67 = vcmask 31744
    %s68 = scalar_lea.vmem [#allocation2], 18
    %69 = vst.msk [vmem:[%s68] sm:$0x1] %vm67, %v66
    %v70 = vld [vmem:[#allocation3] sm:$0x1]
    %71 = vrot.lane.b32.xlu0 %v70, 84
    %v72 = vpop.permute.xlu0 %71
    %vm73 = vcmask 31744
    %s74 = scalar_lea.vmem [#allocation2], 19
    %75 = vst.msk [vmem:[%s74] sm:$0x1] %vm73, %v72
    %v76 = vld [vmem:[#allocation3] sm:$0x1]
    %77 = vrot.lane.b32.xlu0 %v76, 80
    %v78 = vpop.permute.xlu0 %77
    %vm79 = vcmask 31744
    %s80 = scalar_lea.vmem [#allocation2], 24
    %81 = vst.msk [vmem:[%s80] sm:$0x1] %vm79, %v78
    %v82 = vld [vmem:[#allocation3] sm:$0x1]
    %83 = vrot.lane.b32.xlu0 %v82, 76
    %v84 = vpop.permute.xlu0 %83
    %vm85 = vcmask 31744
    %s86 = scalar_lea.vmem [#allocation2], 25
    %87 = vst.msk [vmem:[%s86] sm:$0x1] %vm85, %v84
    %v88 = vld [vmem:[#allocation3] sm:$0x1]
    %89 = vrot.lane.b32.xlu0 %v88, 72
    %v90 = vpop.permute.xlu0 %89
    %vm91 = vcmask 31744
    %s92 = scalar_lea.vmem [#allocation2], 26
    %93 = vst.msk [vmem:[%s92] sm:$0x1] %vm91, %v90
    %v94 = vld [vmem:[#allocation3] sm:$0x1]
    %95 = vrot.lane.b32.xlu0 %v94, 68
    %v96 = vpop.permute.xlu0 %95
    %vm97 = vcmask 31744
    %s98 = scalar_lea.vmem [#allocation2], 27
    %99 = vst.msk [vmem:[%s98] sm:$0x1] %vm97, %v96
    %v100 = vld [vmem:[#allocation3] sm:$0x1]
    %101 = vrot.lane.b32.xlu0 %v100, 64
    %v102 = vpop.permute.xlu0 %101
    %vm103 = vcmask 31744
    %s104 = scalar_lea.vmem [#allocation2], 32
    %105 = vst.msk [vmem:[%s104] sm:$0x1] %vm103, %v102
    %v106 = vld [vmem:[#allocation3] sm:$0x1]
    %107 = vrot.lane.b32.xlu0 %v106, 60
    %v108 = vpop.permute.xlu0 %107
    %vm109 = vcmask 31744
    %s110 = scalar_lea.vmem [#allocation2], 33
    %111 = vst.msk [vmem:[%s110] sm:$0x1] %vm109, %v108
    %v112 = vld [vmem:[#allocation3] sm:$0x1]
    %113 = vrot.lane.b32.xlu0 %v112, 56
    %v114 = vpop.permute.xlu0 %113
    %vm115 = vcmask 31744
    %s116 = scalar_lea.vmem [#allocation2], 34
    %117 = vst.msk [vmem:[%s116] sm:$0x1] %vm115, %v114
    %v118 = vld [vmem:[#allocation3] sm:$0x1]
    %119 = vrot.lane.b32.xlu0 %v118, 52
    %v120 = vpop.permute.xlu0 %119
    %vm121 = vcmask 31744
    %s122 = scalar_lea.vmem [#allocation2], 35
    %123 = vst.msk [vmem:[%s122] sm:$0x1] %vm121, %v120
    %v124 = vld [vmem:[#allocation3] sm:$0x1]
    %125 = vrot.lane.b32.xlu0 %v124, 48
    %v126 = vpop.permute.xlu0 %125
    %vm127 = vcmask 31744
    %s128 = scalar_lea.vmem [#allocation2], 40
    %129 = vst.msk [vmem:[%s128] sm:$0x1] %vm127, %v126
    %v130 = vld [vmem:[#allocation3] sm:$0x1]
    %131 = vrot.lane.b32.xlu0 %v130, 44
    %v132 = vpop.permute.xlu0 %131
    %vm133 = vcmask 31744
    %s134 = scalar_lea.vmem [#allocation2], 41
    %135 = vst.msk [vmem:[%s134] sm:$0x1] %vm133, %v132
    %v136 = vld [vmem:[#allocation3] sm:$0x1]
    %137 = vrot.lane.b32.xlu0 %v136, 40
    %v138 = vpop.permute.xlu0 %137
    %vm139 = vcmask 31744
    %s140 = scalar_lea.vmem [#allocation2], 42
    %141 = vst.msk [vmem:[%s140] sm:$0x1] %vm139, %v138
    %v142 = vld [vmem:[#allocation3] sm:$0x1]
    %143 = vrot.lane.b32.xlu0 %v142, 36
    %v144 = vpop.permute.xlu0 %143
    %vm145 = vcmask 31744
    %s146 = scalar_lea.vmem [#allocation2], 43
    %147 = vst.msk [vmem:[%s146] sm:$0x1] %vm145, %v144
    %v148 = vld [vmem:[#allocation3] sm:$0x1]
    %149 = vrot.lane.b32.xlu0 %v148, 32
    %v150 = vpop.permute.xlu0 %149
    %vm151 = vcmask 31744
    %s152 = scalar_lea.vmem [#allocation2], 48
    %153 = vst.msk [vmem:[%s152] sm:$0x1] %vm151, %v150
    %v154 = vld [vmem:[#allocation3] sm:$0x1]
    %155 = vrot.lane.b32.xlu0 %v154, 28
    %v156 = vpop.permute.xlu0 %155
    %vm157 = vcmask 31744
    %s158 = scalar_lea.vmem [#allocation2], 49
    %159 = vst.msk [vmem:[%s158] sm:$0x1] %vm157, %v156
    %v160 = vld [vmem:[#allocation3] sm:$0x1]
    %161 = vrot.lane.b32.xlu0 %v160, 24
    %v162 = vpop.permute.xlu0 %161
    %vm163 = vcmask 31744
    %s164 = scalar_lea.vmem [#allocation2], 50
    %165 = vst.msk [vmem:[%s164] sm:$0x1] %vm163, %v162
    %v166 = vld [vmem:[#allocation3] sm:$0x1]
    %167 = vrot.lane.b32.xlu0 %v166, 20
    %v168 = vpop.permute.xlu0 %167
    %vm169 = vcmask 31744
    %s170 = scalar_lea.vmem [#allocation2], 51
    %171 = vst.msk [vmem:[%s170] sm:$0x1] %vm169, %v168
    %v172 = vld [vmem:[#allocation3] sm:$0x1]
    %173 = vrot.lane.b32.xlu0 %v172, 16
    %v174 = vpop.permute.xlu0 %173
    %vm175 = vcmask 31744
    %s176 = scalar_lea.vmem [#allocation2], 56
    %177 = vst.msk [vmem:[%s176] sm:$0x1] %vm175, %v174
    %v178 = vld [vmem:[#allocation3] sm:$0x1]
    %179 = vrot.lane.b32.xlu0 %v178, 12
    %v180 = vpop.permute.xlu0 %179
    %vm181 = vcmask 31744
    %s182 = scalar_lea.vmem [#allocation2], 57
    %183 = vst.msk [vmem:[%s182] sm:$0x1] %vm181, %v180
    %v184 = vld [vmem:[#allocation3] sm:$0x1]
    %185 = vrot.lane.b32.xlu0 %v184, 8
    %v186 = vpop.permute.xlu0 %185
    %vm187 = vcmask 31744
    %s188 = scalar_lea.vmem [#allocation2], 58
    %189 = vst.msk [vmem:[%s188] sm:$0x1] %vm187, %v186
    %v190 = vld [vmem:[#allocation3] sm:$0x1]
    %191 = vrot.lane.b32.xlu0 %v190, 4
    %v192 = vpop.permute.xlu0 %191
    %vm193 = vcmask 31744
    %s194 = scalar_lea.vmem [#allocation2], 59
    %195 = vst.msk [vmem:[%s194] sm:$0x1] %vm193, %v192
    %s197 = ssub.s32 16, 1
    %v198 = vld [vmem:[#allocation2] sm:%s197]
    %s200 = ssub.s32 16, 1
    %201 = vst [vmem:[#allocation0] sm:%s200] %v198
    %s202 = scalar_lea.vmem [#allocation2], 8
    %v203 = vld [vmem:[%s202] sm:%s197]
    %s205 = ssub.s32 16, 1
    %s206 = scalar_lea.vmem [#allocation0], 4
    %207 = vst [vmem:[%s206] sm:%s205] %v203
    %s208 = scalar_lea.vmem [#allocation2], 16
    %v209 = vld [vmem:[%s208] sm:%s197]
    %s211 = ssub.s32 16, 1
    %s212 = scalar_lea.vmem [#allocation0], 8
    %213 = vst [vmem:[%s212] sm:%s211] %v209
    %s214 = scalar_lea.vmem [#allocation2], 24
    %v215 = vld [vmem:[%s214] sm:%s197]
    %s217 = ssub.s32 16, 1
    %s218 = scalar_lea.vmem [#allocation0], 12
    %219 = vst [vmem:[%s218] sm:%s217] %v215
    %s220 = scalar_lea.vmem [#allocation2], 32
    %v221 = vld [vmem:[%s220] sm:%s197]
    %s223 = ssub.s32 16, 1
    %s224 = scalar_lea.vmem [#allocation0], 16
    %225 = vst [vmem:[%s224] sm:%s223] %v221
    %s226 = scalar_lea.vmem [#allocation2], 40
    %v227 = vld [vmem:[%s226] sm:%s197]
    %s229 = ssub.s32 16, 1
    %s230 = scalar_lea.vmem [#allocation0], 20
    %231 = vst [vmem:[%s230] sm:%s229] %v227
    %s232 = scalar_lea.vmem [#allocation2], 48
    %v233 = vld [vmem:[%s232] sm:%s197]
    %s235 = ssub.s32 16, 1
    %s236 = scalar_lea.vmem [#allocation0], 24
    %237 = vst [vmem:[%s236] sm:%s235] %v233
    %s238 = scalar_lea.vmem [#allocation2], 56
    %v239 = vld [vmem:[%s238] sm:%s197]
    %s241 = ssub.s32 16, 1
    %s242 = scalar_lea.vmem [#allocation0], 28
    %243 = vst [vmem:[%s242] sm:%s241] %v239
    %245 = vsyncadd [#allocation1], 0
    %s247 = sshll.u32 [#allocation0], 4
    %s248 = int_to_ptr.vmem [resolvable:$true] %s247
    %s249 = sshll.u32 %s1, 4
    %s250 = int_to_ptr.hbm [resolvable:$true] %s249
    %252 = dma.vmem_to_hbm [thread:$0]  %s248, 512, %s250, [#allocation1]
    %254 = dma.done [#allocation1], 512
    %255 = vsyncpa [#allocation1], 1

// kernel: stochastic_pool.1
$region0: #{stochastic_pool.1}
  #allocation0 [shape = 'u32[]', space=smem, size = 0x4, offset = 0x4, fixed_abs, tag = 'smem constant byte address 0x4 - core index']
  #allocation1 [shape = 'u32[72,128]{1,0:T(1,128)}', space=vmem, size = 0x9000, scoped, tag = 'internal scratch']
  %s0 = inlined_call_operand.vmem [shape: f32[16,128], index: 0, kind: input, shape index: {}]
  %s1 = inlined_call_operand.vmem [shape: f32[16,16], index: 1, kind: input, shape index: {}]
  %s2 = inlined_call_operand.vmem [shape: f32[16,16], index: 2, kind: input, shape index: {}]
  %s3 = inlined_call_operand.vmem [shape: f32[1,128], index: 3, kind: input, shape index: {}]
  %s4 = inlined_call_operand.vmem [shape: f32[16,128], index: 4, kind: output, shape index: {0}]
  %s5 = inlined_call_operand.vmem [shape: f32[1,128], index: 5, kind: output, shape index: {1}]
  %6 = xla_tuple %s4, %s5
  %s7 = sld [smem:[#allocation0]]
  $region34: #{stochastic_pool.1} parent=0
    _
  %s9 = ssub.s32 1, %s7
  %s10 = scalar_select 0, %s9, %s7
  // Predicated region
  $region2: #{stochastic_pool.1} parent=0 // pred_check
    _
  $region3: #{stochastic_pool.1} parent=0 // pred_check_branch
    %12 = sbr.rel (0) target = $region5
  $region4: #{stochastic_pool.1} parent=0 // pred_region
    _
  $region5: #{stochastic_pool.1} parent=0 // pred_fallthru
    _
  // Predicated region
  $region6: #{stochastic_pool.1} parent=0 // pred_check
    _
  $region7: #{stochastic_pool.1} parent=0 // pred_check_branch
    %14 = sbr.rel (0) target = $region9
  $region8: #{stochastic_pool.1} parent=0 // pred_region
    _
  $region9: #{stochastic_pool.1} parent=0 // pred_fallthru
    _
  // Predicated region
  $region10: #{stochastic_pool.1} parent=0 // pred_check
    _
  $region11: #{stochastic_pool.1} parent=0 // pred_check_branch
    %16 = sbr.rel (0) target = $region13
  $region12: #{stochastic_pool.1} parent=0 // pred_region
    _
  $region13: #{stochastic_pool.1} parent=0 // pred_fallthru
    _
  // Predicated region
  $region14: #{stochastic_pool.1} parent=0 // pred_check
    _
  $region15: #{stochastic_pool.1} parent=0 // pred_check_branch
    %18 = sbr.rel (0) target = $region17
  $region16: #{stochastic_pool.1} parent=0 // pred_region
    _
  $region17: #{stochastic_pool.1} parent=0 // pred_fallthru
    _
  %v19 = vld [vmem:[%s0] sm:$0xff]
  %v20 = vld [vmem:[%s0 + $0x8] sm:$0xff]
  %v21 = vld [vmem:[%s1] sm:$0xff]
  %v22 = vld [vmem:[%s1 + $0x8] sm:$0xff]
  %v23 = vld [vmem:[%s2] sm:$0xff]
  %v24 = vld [vmem:[%s2 + $0x8] sm:$0xff]
  %v25 = vld [vmem:[%s3] sm:$0x1]
  %vm26 = vcmask 130048
  %v28 = vsel %vm26, %v21, 0
  %v31 = vsel %vm26, %v22, 0
  %33 = vmatpush.msra.mxu0 0.0
  %34 = vmatpush.msra.mxu0 0.0
  %35 = vmatpush.msra.mxu0 0.0
  %36 = vmatpush.msra.mxu0 0.0
  %37 = vmatpush.msra.mxu0 0.0
  %38 = vmatpush.msra.mxu0 0.0
  %39 = vmatpush.msra.mxu0 0.0
  %40 = vmatpush.msra.mxu0 0.0
  %41 = vmatpush.msra.mxu0 0.0
  %42 = vmatpush.msra.mxu0 0.0
  %43 = vmatpush.msra.mxu0 0.0
  %44 = vmatpush.msra.mxu0 0.0
  %45 = vmatpush.msra.mxu0 0.0
  %46 = vmatpush.msra.mxu0 0.0
  %47 = vmatpush.msra.mxu0 %v20
  %48 = vmatpush.msra.mxu0 %v19
  %49 = vmatmul.f32.gmra.mxu0 %v28
  %v50 = vpop.f32.mrf.mxu0
  %v51 = vadd.f32 0.0, %v50
  %52 = vmatmul.f32.gmra.mxu0 %v31
  %v53 = vpop.f32.mrf.mxu0
  %v54 = vadd.f32 0.0, %v53
  %55 = vdwg.mxu0
  %v56 = vtanh.pop %v51
  %v57 = vtanh.pop %v54
  %v59 = vsel %vm26, %v23, 0
  %v62 = vsel %vm26, %v24, 0
  %64 = vmatpush.msra.mxu0 0.0
  %65 = vmatpush.msra.mxu0 0.0
  %66 = vmatpush.msra.mxu0 0.0
  %67 = vmatpush.msra.mxu0 0.0
  %68 = vmatpush.msra.mxu0 0.0
  %69 = vmatpush.msra.mxu0 0.0
  %70 = vmatpush.msra.mxu0 0.0
  %71 = vmatpush.msra.mxu0 0.0
  %72 = vmatpush.msra.mxu0 0.0
  %73 = vmatpush.msra.mxu0 0.0
  %74 = vmatpush.msra.mxu0 0.0
  %75 = vmatpush.msra.mxu0 0.0
  %76 = vmatpush.msra.mxu0 0.0
  %77 = vmatpush.msra.mxu0 0.0
  %78 = vmatpush.msra.mxu0 %v57
  %79 = vmatpush.msra.mxu0 %v56
  %80 = vmatmul.f32.gmra.mxu0 %v59
  %v81 = vpop.f32.mrf.mxu0
  %v82 = vadd.f32 0.0, %v81
  %83 = vmatmul.f32.gmra.mxu0 %v62
  %v84 = vpop.f32.mrf.mxu0
  %v85 = vadd.f32 0.0, %v84
  %86 = vdwg.mxu0
  %v87 = vmax.f32 %v82, %v85
  %v88 = vrot.slane %v87, 4
  %v89 = vmax.f32 %v87, %v88
  %v90 = vrot.slane %v89, 2
  %v91 = vmax.f32 %v89, %v90
  %v92 = vrot.slane %v91, 1
  %v93 = vmax.f32 %v91, %v92
  %v94 = vsub.f32 %v82, %v93
  %v95 = vsub.f32 %v85, %v93
  %v96 = vmul.f32 %v94, 1.442695
  %v97 = vpow.pop %v96
  %v98 = vmul.f32 %v95, 1.442695
  %v99 = vpow.pop %v98
  %v100 = vadd.f32 %v97, %v99
  %v101 = vrot.slane %v100, 4
  %v102 = vadd.f32 %v100, %v101
  %v103 = vrot.slane %v102, 2
  %v104 = vadd.f32 %v102, %v103
  %v105 = vrot.slane %v104, 1
  %v106 = vadd.f32 %v104, %v105
  %v107 = vrcp.pop %v106
  %v108 = vmul.f32 %v106, %v107
  %v109 = vsub.f32 1.0, %v108
  %v110 = vmul.f32 %v107, %v109
  %v111 = vadd.f32 %v107, %v110
  %vm112 = vweird.f32 %v106
  %vm113 = vweird.f32 %v107
  %vm114 = vmor %vm112, %vm113
  %v115 = vsel %vm114, %v107, %v111
  %v116 = vand.u32 2147483647, %v106
  %vm117 = vcmp.eq.f32.partialorder %v116, 8.507059e+37
  %v118 = vand.u32 %v106, 2147483648
  %v119 = vor.u32 1.1754944e-38, %v118
  %v120 = vsel %vm117, %v119, %v115
  %v121 = vmul.f32 1.0, %v120
  %v122 = vmul.f32 %v97, %v121
  %v123 = vmul.f32 %v99, %v121
  %124 = vst [vmem:[%s4] sm:$0xff] %v122
  %125 = vst [vmem:[%s4 + $0x8] sm:$0xff] %v123
  %v126 = vlaneseq
  %v127 = vshrl.u32 %v126, 7
  %v128 = vadd.s32 %v127, 8
  %v129 = vlaneseq
  %v130 = vand.u32 %v129, 127
  %vm131 = vcmp.le.s32.totalorder %v130, %v127
  %vm132 = vcmp.le.s32.totalorder %v130, %v128
  %v133 = vsel %vm131, 1, 0
  %v134 = vsel %vm132, 1, 0
  %v135 = vcvt.s32.f32 %v133
  %v136 = vcvt.s32.f32 %v134
  %v138 = vsel %vm26, %v135, 0
  %v141 = vsel %vm26, %v136, 0
  %143 = vmatpush.msra.mxu0 0.0
  %144 = vmatpush.msra.mxu0 0.0
  %145 = vmatpush.msra.mxu0 0.0
  %146 = vmatpush.msra.mxu0 0.0
  %147 = vmatpush.msra.mxu0 0.0
  %148 = vmatpush.msra.mxu0 0.0
  %149 = vmatpush.msra.mxu0 0.0
  %150 = vmatpush.msra.mxu0 0.0
  %151 = vmatpush.msra.mxu0 0.0
  %152 = vmatpush.msra.mxu0 0.0
  %153 = vmatpush.msra.mxu0 0.0
  %154 = vmatpush.msra.mxu0 0.0
  %155 = vmatpush.msra.mxu0 0.0
  %156 = vmatpush.msra.mxu0 0.0
  %157 = vmatpush.msra.mxu0 %v99
  %158 = vmatpush.msra.mxu0 %v97
  %159 = vmatmul.f32.gmra.mxu0 %v138
  %v160 = vpop.f32.mrf.mxu0
  %v161 = vadd.f32 0.0, %v160
  %162 = vmatmul.f32.gmra.mxu0 %v141
  %v163 = vpop.f32.mrf.mxu0
  %v164 = vadd.f32 0.0, %v163
  %165 = vdwg.mxu0
  %v166 = vmul.f32 %v25, %v106
  %v168 = vperm.slane %v166, 0
  %vm170 = vcmp.lt.f32.partialorder %v161, %v168
  %vm171 = vcmp.lt.f32.partialorder %v164, %v168
  %v172 = vsel %vm170, 1, 0
  %v173 = vsel %vm171, 1, 0
  %v174 = vadd.s32 %v172, %v173
  %v175 = vrot.slane %v174, 4
  %v176 = vadd.s32 %v174, %v175
  %v177 = vrot.slane %v176, 2
  %v178 = vadd.s32 %v176, %v177
  %v179 = vrot.slane %v178, 1
  %v180 = vadd.s32 %v178, %v179
  %vm181 = vcmp.lt.s32.totalorder %v180, 15
  %v182 = vsel %vm181, %v180, 15
  %vm183 = vcmp.eq.s32.totalorder %v127, %v182
  %vm184 = vcmp.eq.s32.totalorder %v128, %v182
  %v185 = vsel %vm183, 1, 0
  %v186 = vsel %vm184, 1, 0
  %v187 = vcvt.s32.f32 %v185
  %v188 = vcvt.s32.f32 %v186
  %v189 = vmul.f32 %v19, %v187
  %v190 = vmul.f32 %v20, %v188
  %v191 = vadd.f32 %v189, %v190
  %v192 = vrot.slane %v191, 4
  %v193 = vadd.f32 %v191, %v192
  %v194 = vrot.slane %v193, 2
  %v195 = vadd.f32 %v193, %v194
  %v196 = vrot.slane %v195, 1
  %v197 = vadd.f32 %v195, %v196
  %198 = vst [vmem:[%s5] sm:$0x1] %v197
  // Predicated region
  $region18: #{stochastic_pool.1} parent=0 // pred_check
    _
  $region19: #{stochastic_pool.1} parent=0 // pred_check_branch
    %200 = sbr.rel (0) target = $region21
  $region20: #{stochastic_pool.1} parent=0 // pred_region
    _
  $region21: #{stochastic_pool.1} parent=0 // pred_fallthru
    _
  // Predicated region
  $region22: #{stochastic_pool.1} parent=0 // pred_check
    _
  $region23: #{stochastic_pool.1} parent=0 // pred_check_branch
    %202 = sbr.rel (0) target = $region25
  $region24: #{stochastic_pool.1} parent=0 // pred_region
    _
  $region25: #{stochastic_pool.1} parent=0 // pred_fallthru
    _
  // Predicated region
  $region26: #{stochastic_pool.1} parent=0 // pred_check
    _
  $region27: #{stochastic_pool.1} parent=0 // pred_check_branch
    %204 = sbr.rel (0) target = $region29
  $region28: #{stochastic_pool.1} parent=0 // pred_region
    _
  $region29: #{stochastic_pool.1} parent=0 // pred_fallthru
    _
  // Predicated region
  $region30: #{stochastic_pool.1} parent=0 // pred_check
    _
  $region31: #{stochastic_pool.1} parent=0 // pred_check_branch
    %206 = sbr.rel (0) target = $region33
  $region32: #{stochastic_pool.1} parent=0 // pred_region
    _
  $region33: #{stochastic_pool.1} parent=0 // pred_fallthru
    _

</llo_original>
